<compile_context>
chip_gen: v7x
topology: tpu7x:2x2x1
jax: 0.10.0
libtpu: 0.0.40
codegen_flags: <defaults>
</compile_context>

<pallas_src>
import functools

import jax
import jax.numpy as jnp
from jax.experimental import pallas as pl
from jax.experimental.pallas import tpu as pltpu

LANE = 128
BF16_SUBLANE = 16           # bf16 packs 16 rows per vreg
NEG_BIG = -1e30             # finite "minus infinity" for masked logit lanes


def _round_up(n, m):
    return ((n + m - 1) // m) * m


def _pad2d(a, rows, cols, fill=0.0):
    r, c = a.shape
    if r == rows and c == cols:
        return a
    return jnp.pad(a, ((0, rows - r), (0, cols - c)), constant_values=fill)


def two_layer_nn_kernel(x_ref, w1_ref, b1_ref, w4_ref, b4_ref, o_ref):
    # fc1: x @ W1 (bf16 operands -> MXU, f32 accumulation)
    h = jnp.dot(x_ref[...], w1_ref[...], preferred_element_type=jnp.float32)
    # bias + ReLU + downcast in a single expression so only the bf16 h stays live
    h = jnp.maximum(h + b1_ref[...], 0.0).astype(w4_ref.dtype)
    # fc4: padded W4 columns are zero and padded b4 lanes are -1e30, so padded
    # logit lanes are ~-1e30 -> exp() == 0 and the softmax is unchanged.
    logits = jnp.dot(h, w4_ref[...], preferred_element_type=jnp.float32) + b4_ref[...]
    # numerically stable softmax over the feature axis (== PyTorch Softmax(dim=1))
    m = jnp.max(logits, axis=-1, keepdims=True)
    e = jnp.exp(logits - m)
    denom = jnp.sum(e, axis=-1, keepdims=True)
    # exact normalization (approx reciprocal drifted row sums past 1e-3)
    o_ref[...] = (e / denom).astype(o_ref.dtype)


def prepare_params(w1, b1, w4, b4):
    """Pad + cast the weights ONCE, outside the per-forward path.

    w1: (in, hidden), b1: (hidden,)/(1, hidden), w4: (hidden, out), b4: (out,)/(1, out).
    Returns lane-dense (multiple-of-128) bf16 weights, f32 biases, and the true out_dim.
    Padded fc4 bias lanes carry -1e30 so the kernel needs no softmax mask.
    """
    in_dim, hid_dim = w1.shape
    out_dim = w4.shape[1]
    in_p = _round_up(max(in_dim, LANE), LANE)
    hid_p = _round_up(max(hid_dim, LANE), LANE)
    out_p = _round_up(max(out_dim, LANE), LANE)

    f32, bf16 = jnp.float32, jnp.bfloat16
    w1_p = _pad2d(w1.astype(f32), in_p, hid_p).astype(bf16)
    b1_p = _pad2d(b1.astype(f32).reshape(1, -1), 1, hid_p)
    w4_p = _pad2d(w4.astype(f32), hid_p, out_p).astype(bf16)
    b4_p = _pad2d(b4.astype(f32).reshape(1, -1), 1, out_p, fill=NEG_BIG)
    return (w1_p, b1_p, w4_p, b4_p), out_dim


@functools.partial(jax.jit, static_argnames=("out_dim", "block_b", "out_dtype"))
def two_layer_nn_forward(x, w1_p, b1_p, w4_p, b4_p, *, out_dim,
                         block_b=512, out_dtype=jnp.float32):
    """x: (B, in_dim); w*_p / b*_p from prepare_params. Returns (B, out_dim) probs."""
    B, _ = x.shape
    in_p, hid_p = w1_p.shape
    out_p = w4_p.shape[1]
    out_bytes = jnp.dtype(out_dtype).itemsize

    # --- batch tiling --------------------------------------------------------
    sub = BF16_SUBLANE                           # x is fed to the MXU as bf16
    b_need = _round_up(B, sub)
    tb = min(block_b, b_need)
    # keep >= 2 grid steps when possible so v7x's two TensorCores both get work
    if b_need >= 2 * sub:
        tb = min(tb, _round_up(pl.cdiv(b_need, 2), sub))
    tb = _round_up(tb, sub)

    # single-buffer big weights: constant index_map => second buffer is pure waste
    weight_bytes = (in_p * hid_p + hid_p * out_p) * 2 + (hid_p + out_p) * 4
    single_buffer_weights = weight_bytes >= (1 << 20)

    def footprint(t):
        w_bufs = 1 if single_buffer_weights else 2
        x_bufs = 2 * t * in_p * 2                 # double-buffered bf16 x tiles
        o_bufs = 2 * t * out_p * out_bytes        # double-buffered output tiles
        live = t * 4 * max(hid_p, out_p)          # f32 h / logits live inside the step
        return w_bufs * weight_bytes + x_bufs + o_bufs + live

    # shrink the batch tile until the per-step footprint fits every generation
    # (48 MiB budget leaves headroom even on v7x's 64 MiB VMEM per TensorCore)
    VMEM_BUDGET = 48 * 1024 * 1024
    while tb > sub and footprint(tb) > VMEM_BUDGET:
        tb -= sub

    b_p = _round_up(b_need, tb)
    n_blocks = b_p // tb
    vmem_limit = int(min(max(32 * 1024 * 1024, footprint(tb) * 5 // 4),
                         96 * 1024 * 1024))

    # per-call x pad/cast stays inside this jit so it can fuse with the producer
    x_p = _pad2d(x.astype(jnp.bfloat16), b_p, in_p)

    def const_spec(shape):
        if single_buffer_weights:
            return pl.BlockSpec(shape, lambda i: (0, 0), pipeline_mode=pl.Buffered(1))
        return pl.BlockSpec(shape, lambda i: (0, 0))

    cost = pl.CostEstimate(
        flops=2 * b_p * (in_p * hid_p + hid_p * out_p),
        transcendentals=b_p * out_p,
        bytes_accessed=(b_p * in_p * 2 + weight_bytes + b_p * out_p * out_bytes),
    )

    out_padded = pl.pallas_call(
        two_layer_nn_kernel,
        out_shape=jax.ShapeDtypeStruct((b_p, out_p), out_dtype),
        grid=(n_blocks,),
        in_specs=[
            pl.BlockSpec((tb, in_p), lambda i: (i, 0)),       # x: streamed over batch
            const_spec((in_p, hid_p)),                        # W1: VMEM-resident
            const_spec((1, hid_p)),                           # b1
            const_spec((hid_p, out_p)),                       # W4
            const_spec((1, out_p)),                           # b4 (padded lanes = -1e30)
        ],
        out_specs=pl.BlockSpec((tb, out_p), lambda i: (i, 0)),
        compiler_params=pltpu.CompilerParams(
            dimension_semantics=("parallel",),                # megacore split on v7x
            vmem_limit_bytes=vmem_limit,
        ),
        cost_estimate=cost,
    )(x_p, w1_p, b1_p, w4_p, b4_p)

    # drop batch padding and padded output lanes (fused inside this same jit)
    return out_padded[:B, :out_dim]


def init_params(key, input_size, hidden_size, output_size):
    """Mimics PyTorch nn.Linear default init (U[-1/sqrt(fan_in), 1/sqrt(fan_in)]).

    NOTE: fc2 / fc3 exist in the PyTorch __init__ but are unused in forward();
    they are intentionally not materialized.
    """
    k1, k2, k3, k4 = jax.random.split(key, 4)
    bound1 = 1.0 / jnp.sqrt(input_size)
    bound4 = 1.0 / jnp.sqrt(hidden_size)
    # stored transposed: (in_features, out_features)
    w1 = jax.random.uniform(k1, (input_size, hidden_size), jnp.float32, -bound1, bound1)
    b1 = jax.random.uniform(k2, (1, hidden_size), jnp.float32, -bound1, bound1)
    w4 = jax.random.uniform(k3, (hidden_size, output_size), jnp.float32, -bound4, bound4)
    b4 = jax.random.uniform(k4, (1, output_size), jnp.float32, -bound4, bound4)
    return w1, b1, w4, b4


if __name__ == "__main__":
    key = jax.random.PRNGKey(0)
    batch, input_size, hidden_size, output_size = 8, 32, 32, 16

    kx, kp = jax.random.split(key)
    x = jax.random.normal(kx, (batch, input_size), dtype=jnp.float32)
    w1, b1, w4, b4 = init_params(kp, input_size, hidden_size, output_size)

    # weights are padded / cast once, outside the per-forward path
    (w1_p, b1_p, w4_p, b4_p), out_dim = prepare_params(w1, b1, w4, b4)

    out = two_layer_nn_forward(x, w1_p, b1_p, w4_p, b4_p, out_dim=out_dim)
    out = jax.block_until_ready(out)

    # plain-JAX f32 reference of the PyTorch forward (fc1 -> ReLU -> fc4 -> softmax)
    h_ref = jnp.maximum(x @ w1 + b1, 0.0)
    ref = jax.nn.softmax(h_ref @ w4 + b4, axis=1)

    assert out.shape == (batch, output_size)
    # exact in-kernel normalization => rows sum to 1 to float32 precision
    assert bool(jnp.allclose(jnp.sum(out, axis=1), 1.0, atol=1e-3))
    # bf16 matmul operands => loose tolerance vs the f32 reference
    assert bool(jnp.allclose(out, ref, atol=2e-2, rtol=0))

    print("KERNEL_OK")
</pallas_src>

<mosaic_0001>
module attributes {stable_mosaic.version = 11 : i64} {
  func.func @two_layer_nn_kernel(%arg0: i32, %arg1: memref<16x128xbf16, #tpu.memory_space<vmem>>, %arg2: memref<128x128xbf16, #tpu.memory_space<vmem>>, %arg3: memref<1x128xf32, #tpu.memory_space<vmem>>, %arg4: memref<128x128xbf16, #tpu.memory_space<vmem>>, %arg5: memref<1x128xf32, #tpu.memory_space<vmem>>, %arg6: memref<16x128xf32, #tpu.memory_space<vmem>>) attributes {dimension_semantics = [#tpu.dimension_semantics<parallel>], iteration_bounds = array<i64: 1>, scalar_prefetch = 0 : i64, scratch_operands = 0 : i64, tpu.core_type = #tpu.core_type<tc>, window_params = [{transform_indices = @transform_0, window_bounds = array<i64: 16, 128>}, {pipeline_mode = #tpu.pipeline_mode<synchronous>, transform_indices = @transform_1, window_bounds = array<i64: 128, 128>}, {pipeline_mode = #tpu.pipeline_mode<synchronous>, transform_indices = @transform_2, window_bounds = array<i64: 1, 128>}, {pipeline_mode = #tpu.pipeline_mode<synchronous>, transform_indices = @transform_3, window_bounds = array<i64: 128, 128>}, {pipeline_mode = #tpu.pipeline_mode<synchronous>, transform_indices = @transform_4, window_bounds = array<i64: 1, 128>}, {transform_indices = @transform_5, window_bounds = array<i64: 16, 128>}]} {
    %c0 = arith.constant 0 : index
    %c0_0 = arith.constant 0 : index
    %0 = vector.load %arg1[%c0, %c0_0] : memref<16x128xbf16, #tpu.memory_space<vmem>>, vector<16x128xbf16>
    %c0_1 = arith.constant 0 : index
    %c0_2 = arith.constant 0 : index
    %1 = vector.load %arg2[%c0_1, %c0_2] : memref<128x128xbf16, #tpu.memory_space<vmem>>, vector<128x128xbf16>
    %cst = arith.constant dense<0.000000e+00> : vector<16x128xf32>
    %2 = tpu.matmul %0, %1, %cst {dimension_numbers = #tpu.dot_dimension_numbers<[1], [0], [0], [1], [0, 0, 1, 1], [], []>} : vector<16x128xbf16>, vector<128x128xbf16>, vector<16x128xf32> -> vector<16x128xf32>
    %c0_3 = arith.constant 0 : index
    %c0_4 = arith.constant 0 : index
    %3 = vector.load %arg3[%c0_3, %c0_4] : memref<1x128xf32, #tpu.memory_space<vmem>>, vector<1x128xf32>
    %4 = vector.broadcast %3 : vector<1x128xf32> to vector<16x128xf32>
    %5 = arith.addf %2, %4 : vector<16x128xf32>
    %cst_5 = arith.constant 0.000000e+00 : f32
    %6 = vector.broadcast %cst_5 : f32 to vector<16x128xf32>
    %7 = arith.maximumf %5, %6 : vector<16x128xf32>
    %8 = arith.truncf %7 : vector<16x128xf32> to vector<16x128xbf16>
    %c0_6 = arith.constant 0 : index
    %c0_7 = arith.constant 0 : index
    %9 = vector.load %arg4[%c0_6, %c0_7] : memref<128x128xbf16, #tpu.memory_space<vmem>>, vector<128x128xbf16>
    %cst_8 = arith.constant dense<0.000000e+00> : vector<16x128xf32>
    %10 = tpu.matmul %8, %9, %cst_8 {dimension_numbers = #tpu.dot_dimension_numbers<[1], [0], [0], [1], [0, 0, 1, 1], [], []>} : vector<16x128xbf16>, vector<128x128xbf16>, vector<16x128xf32> -> vector<16x128xf32>
    %c0_9 = arith.constant 0 : index
    %c0_10 = arith.constant 0 : index
    %11 = vector.load %arg5[%c0_9, %c0_10] : memref<1x128xf32, #tpu.memory_space<vmem>>, vector<1x128xf32>
    %12 = vector.broadcast %11 : vector<1x128xf32> to vector<16x128xf32>
    %13 = arith.addf %10, %12 : vector<16x128xf32>
    %cst_11 = arith.constant dense<0xFF800000> : vector<16xf32>
    %14 = vector.multi_reduction <maximumf>, %13, %cst_11 [1] : vector<16x128xf32> to vector<16xf32>
    %15 = vector.shape_cast %14 : vector<16xf32> to vector<16x1xf32>
    %16 = vector.broadcast %15 : vector<16x1xf32> to vector<16x128xf32>
    %17 = arith.subf %13, %16 : vector<16x128xf32>
    %18 = math.exp %17 : vector<16x128xf32>
    %cst_12 = arith.constant dense<0.000000e+00> : vector<16xf32>
    %19 = vector.multi_reduction <add>, %18, %cst_12 [1] : vector<16x128xf32> to vector<16xf32>
    %20 = vector.shape_cast %19 : vector<16xf32> to vector<16x1xf32>
    %21 = vector.broadcast %20 : vector<16x1xf32> to vector<16x128xf32>
    %22 = arith.divf %18, %21 : vector<16x128xf32>
    %c0_13 = arith.constant 0 : index
    %c0_14 = arith.constant 0 : index
    %23 = vector.load %arg6[%c0_13, %c0_14] : memref<16x128xf32, #tpu.memory_space<vmem>>, vector<16x128xf32>
    tpu.vector_store %arg6[%c0_13, %c0_14], %22 {strides = array<i32>} : memref<16x128xf32, #tpu.memory_space<vmem>>, vector<16x128xf32>,
    return
  }
  func.func @transform_0(%arg0: i32) -> (i32, i32) {
    %c0_i32 = arith.constant 0 : i32
    %c0_i32_0 = arith.constant 0 : i32
    return %arg0, %c0_i32 : i32, i32
  }
  func.func @transform_1(%arg0: i32) -> (i32, i32) {
    %c0_i32 = arith.constant 0 : i32
    %c0_i32_0 = arith.constant 0 : i32
    %c0_i32_1 = arith.constant 0 : i32
    return %c0_i32, %c0_i32_0 : i32, i32
  }
  func.func @transform_2(%arg0: i32) -> (i32, i32) {
    %c0_i32 = arith.constant 0 : i32
    %c0_i32_0 = arith.constant 0 : i32
    %c0_i32_1 = arith.constant 0 : i32
    return %c0_i32, %c0_i32_0 : i32, i32
  }
  func.func @transform_3(%arg0: i32) -> (i32, i32) {
    %c0_i32 = arith.constant 0 : i32
    %c0_i32_0 = arith.constant 0 : i32
    %c0_i32_1 = arith.constant 0 : i32
    return %c0_i32, %c0_i32_0 : i32, i32
  }
  func.func @transform_4(%arg0: i32) -> (i32, i32) {
    %c0_i32 = arith.constant 0 : i32
    %c0_i32_0 = arith.constant 0 : i32
    %c0_i32_1 = arith.constant 0 : i32
    return %c0_i32, %c0_i32_0 : i32, i32
  }
  func.func @transform_5(%arg0: i32) -> (i32, i32) {
    %c0_i32 = arith.constant 0 : i32
    %c0_i32_0 = arith.constant 0 : i32
    return %arg0, %c0_i32 : i32, i32
  }
}

</mosaic_0001>

<llo_original>
// kernel: two_layer_nn_forward.1
$region0: #{two_layer_nn_forward.1}
  #allocation0 [shape = 'u32[]', space=smem, size = 0x4, offset = 0x4, fixed_abs, tag = 'smem constant byte address 0x4 - core index']
  #allocation1 [shape = 'u32[144,128]{1,0:T(1,128)}', space=vmem, size = 0x12000, scoped, tag = 'internal scratch']
  %s0 = inlined_call_operand.vmem [shape: bf16[16,128], index: 0, kind: input, shape index: {}]
  %s1 = inlined_call_operand.hbm [shape: bf16[128,128], index: 1, kind: input, shape index: {}]
  %s2 = inlined_call_operand.vmem [shape: f32[1,128], index: 2, kind: input, shape index: {}]
  %s3 = inlined_call_operand.hbm [shape: bf16[128,128], index: 3, kind: input, shape index: {}]
  %s4 = inlined_call_operand.vmem [shape: f32[1,128], index: 4, kind: input, shape index: {}]
  %s5 = inlined_call_operand.vmem [shape: f32[16,128], index: 5, kind: output, shape index: {}]
  %s6 = sld [smem:[#allocation0]]
  $region38: #{two_layer_nn_forward.1} parent=0
    _
  %s8 = ssub.s32 1, %s6
  %s9 = scalar_select 0, %s8, %s6
  $region1: #{two_layer_nn_forward.1} parent=0
    #allocation2 [shape = 'u8[32768]{0}', space=vmem, size = 0x8000, scoped, tag = 'input window, operand 1, single buffered']
    #allocation3 [shape = 's32[1]{0}', space=sflag, size = 0x4, scoped, tag = 'scoped memory for two_layer_nn_forward.1']
    #allocation4 [shape = 'u8[32768]{0}', space=vmem, size = 0x8000, scoped, tag = 'input window, operand 3, single buffered']
    #allocation5 [shape = 's32[1]{0}', space=sflag, size = 0x4, scoped, tag = 'scoped memory for two_layer_nn_forward.1']
    %10 = vsyncpa [#allocation3], 0
    %11 = vsyncpa [#allocation5], 0
    // Predicated region
    $region2: #{two_layer_nn_forward.1} parent=1 // pred_check
      _
    $region3: #{two_layer_nn_forward.1} parent=1 // pred_check_branch
      %13 = sbr.rel (0) target = $region5
    $region4: #{two_layer_nn_forward.1} parent=1 // pred_region
      _
    $region5: #{two_layer_nn_forward.1} parent=1 // pred_fallthru
      _
    // Predicated region
    $region6: #{two_layer_nn_forward.1} parent=1 // pred_check
      _
    $region7: #{two_layer_nn_forward.1} parent=1 // pred_check_branch
      %15 = sbr.rel (0) target = $region9
    $region8: #{two_layer_nn_forward.1} parent=1 // pred_region
      %s17 = ssub.s32 1024, 1024
      %18 = vsyncadd [#allocation3], %s17
      %s19 = sshll.u32 [#allocation2], 4
      %s20 = int_to_ptr.vmem [resolvable:$true] %s19
      %25 = dma.hbm_to_vmem [thread:$0]  %s1, 1024, %s20, [#allocation3], 64, 64, 4
    $region9: #{two_layer_nn_forward.1} parent=1 // pred_fallthru
      _
    // Predicated region
    $region10: #{two_layer_nn_forward.1} parent=1 // pred_check
      _
    $region11: #{two_layer_nn_forward.1} parent=1 // pred_check_branch
      %27 = sbr.rel (0) target = $region13
    $region12: #{two_layer_nn_forward.1} parent=1 // pred_region
      _
    $region13: #{two_layer_nn_forward.1} parent=1 // pred_fallthru
      _
    // Predicated region
    $region14: #{two_layer_nn_forward.1} parent=1 // pred_check
      _
    $region15: #{two_layer_nn_forward.1} parent=1 // pred_check_branch
      %29 = sbr.rel (0) target = $region17
    $region16: #{two_layer_nn_forward.1} parent=1 // pred_region
      %s31 = ssub.s32 1024, 1024
      %32 = vsyncadd [#allocation5], %s31
      %s33 = sshll.u32 [#allocation4], 4
      %s34 = int_to_ptr.vmem [resolvable:$true] %s33
      %39 = dma.hbm_to_vmem [thread:$0]  %s3, 1024, %s34, [#allocation5], 64, 64, 4
    $region17: #{two_layer_nn_forward.1} parent=1 // pred_fallthru
      _
    // Predicated region
    $region18: #{two_layer_nn_forward.1} parent=1 // pred_check
      _
    $region19: #{two_layer_nn_forward.1} parent=1 // pred_check_branch
      %41 = sbr.rel (0) target = $region21
    $region20: #{two_layer_nn_forward.1} parent=1 // pred_region
      _
    $region21: #{two_layer_nn_forward.1} parent=1 // pred_fallthru
      _
    // Predicated region
    $region22: #{two_layer_nn_forward.1} parent=1 // pred_check
      _
    $region23: #{two_layer_nn_forward.1} parent=1 // pred_check_branch
      %43 = sbr.rel (0) target = $region25
    $region24: #{two_layer_nn_forward.1} parent=1 // pred_region
      %44 = dma.done [#allocation3], 1024
    $region25: #{two_layer_nn_forward.1} parent=1 // pred_fallthru
      _
    // Predicated region
    $region26: #{two_layer_nn_forward.1} parent=1 // pred_check
      _
    $region27: #{two_layer_nn_forward.1} parent=1 // pred_check_branch
      %46 = sbr.rel (0) target = $region29
    $region28: #{two_layer_nn_forward.1} parent=1 // pred_region
      %47 = dma.done [#allocation5], 1024
    $region29: #{two_layer_nn_forward.1} parent=1 // pred_fallthru
      _
    %v49 = vld [vmem:[%s0] sm:$0xf]
    %v50 = vld [vmem:[%s0 + $0x4] sm:$0xf]
    %v51 = vld [vmem:[#allocation2] sm:$0xf]
    %v52 = vld [vmem:[#allocation2 + $0x4] sm:$0xf]
    %v53 = vld [vmem:[#allocation2 + $0x8] sm:$0xf]
    %v54 = vld [vmem:[#allocation2 + $0xc] sm:$0xf]
    %v55 = vld [vmem:[#allocation2 + $0x10] sm:$0xf]
    %v56 = vld [vmem:[#allocation2 + $0x14] sm:$0xf]
    %v57 = vld [vmem:[#allocation2 + $0x18] sm:$0xf]
    %v58 = vld [vmem:[#allocation2 + $0x1c] sm:$0xf]
    %v59 = vld [vmem:[#allocation2 + $0x20] sm:$0xf]
    %v60 = vld [vmem:[#allocation2 + $0x24] sm:$0xf]
    %v61 = vld [vmem:[#allocation2 + $0x28] sm:$0xf]
    %v62 = vld [vmem:[#allocation2 + $0x2c] sm:$0xf]
    %v63 = vld [vmem:[#allocation2 + $0x30] sm:$0xf]
    %v64 = vld [vmem:[#allocation2 + $0x34] sm:$0xf]
    %v65 = vld [vmem:[#allocation2 + $0x38] sm:$0xf]
    %v66 = vld [vmem:[#allocation2 + $0x3c] sm:$0xf]
    %v67 = vld [vmem:[%s2] sm:$0x1]
    %v69 = vlaneseq
    %v70 = vshrl.u32 %v69, 7
    %v71 = vsub.s32 0, %v70
    %v72 = vrot.slane %v67, %v71
    %v76 = vunpack.c.l.b16 %v49
    %v77 = vunpack.c.l.b16 %v50
    %v78 = vpack.c.b16 %v77, %v76
    %v96 = vunpack.c.l.b16 %v51
    %v97 = vunpack.c.l.b16 %v52
    %v98 = vunpack.c.l.b16 %v53
    %v99 = vunpack.c.l.b16 %v54
    %v100 = vunpack.c.l.b16 %v55
    %v101 = vunpack.c.l.b16 %v56
    %v102 = vunpack.c.l.b16 %v57
    %v103 = vunpack.c.l.b16 %v58
    %v104 = vunpack.c.l.b16 %v59
    %v105 = vunpack.c.l.b16 %v60
    %v106 = vunpack.c.l.b16 %v61
    %v107 = vunpack.c.l.b16 %v62
    %v108 = vunpack.c.l.b16 %v63
    %v109 = vunpack.c.l.b16 %v64
    %v110 = vunpack.c.l.b16 %v65
    %v111 = vunpack.c.l.b16 %v66
    %v112 = vpack.c.b16 %v97, %v96
    %v113 = vpack.c.b16 %v99, %v98
    %v114 = vpack.c.b16 %v101, %v100
    %v115 = vpack.c.b16 %v103, %v102
    %v116 = vpack.c.b16 %v105, %v104
    %v117 = vpack.c.b16 %v107, %v106
    %v118 = vpack.c.b16 %v109, %v108
    %v119 = vpack.c.b16 %v111, %v110
    %128 = vmatprep.subr.bf16.mxu0 0
    %129 = vmatpush1.bf16.msra.mxu0 %v112
    %130 = vmatprep.subr.bf16.mxu0 0
    %131 = vmatpush1.bf16.msra.mxu0 %v113
    %132 = vmatprep.subr.bf16.mxu0 0
    %133 = vmatpush1.bf16.msra.mxu0 %v114
    %134 = vmatprep.subr.bf16.mxu0 0
    %135 = vmatpush1.bf16.msra.mxu0 %v115
    %136 = vmatprep.subr.bf16.mxu0 0
    %137 = vmatpush1.bf16.msra.mxu0 %v116
    %138 = vmatprep.subr.bf16.mxu0 0
    %139 = vmatpush1.bf16.msra.mxu0 %v117
    %140 = vmatprep.subr.bf16.mxu0 0
    %141 = vmatpush1.bf16.msra.mxu0 %v118
    %142 = vmatprep.subr.bf16.mxu0 0
    %143 = vmatpush1.bf16.msra.mxu0 %v119
    %144 = vmatprep.subr.bf16.mxu0 0
    %145 = vmatpush1.bf16.msra.mxu0 0
    %146 = vmatprep.subr.bf16.mxu0 0
    %147 = vmatpush1.bf16.msra.mxu0 0
    %148 = vmatprep.subr.bf16.mxu0 0
    %149 = vmatpush1.bf16.msra.mxu0 0
    %150 = vmatprep.subr.bf16.mxu0 0
    %151 = vmatpush1.bf16.msra.mxu0 0
    %152 = vmatprep.subr.bf16.mxu0 0
    %153 = vmatpush1.bf16.msra.mxu0 0
    %154 = vmatprep.subr.bf16.mxu0 0
    %155 = vmatpush1.bf16.msra.mxu0 0
    %156 = vmatprep.subr.bf16.mxu0 0
    %157 = vmatpush1.bf16.msra.mxu0 0
    %158 = vmatprep.subr.bf16.mxu0 0
    %159 = vmatpush1.bf16.msra.mxu0 0
    %160 = vmatprep.mubr.bf16.mxu0 0
    %161 = vmatmul.mubr.bf16.gmra.mrb[0].mxu0 %v78
    %v162 = vpop.f32.mrb[0].mxu0
    %v163 = vadd.f32 %v72, %v162
    %v164 = vpop.f32.mrb[0].mxu0
    %v165 = vpop.f32.mrb[0].mxu0
    %v166 = vadd.f32 %v72, %v165
    %v167 = vpop.f32.mrb[0].mxu0
    %168 = vdwg.mxu0
    %v169 = vmax.f32 %v163, 0.0
    %v170 = vmax.f32 %v166, 0.0
    %v171 = vpack.c.bf16 %v170, %v169
    %v172 = vld [vmem:[#allocation4] sm:$0xf]
    %v173 = vld [vmem:[#allocation4 + $0x4] sm:$0xf]
    %v174 = vld [vmem:[#allocation4 + $0x8] sm:$0xf]
    %v175 = vld [vmem:[#allocation4 + $0xc] sm:$0xf]
    %v176 = vld [vmem:[#allocation4 + $0x10] sm:$0xf]
    %v177 = vld [vmem:[#allocation4 + $0x14] sm:$0xf]
    %v178 = vld [vmem:[#allocation4 + $0x18] sm:$0xf]
    %v179 = vld [vmem:[#allocation4 + $0x1c] sm:$0xf]
    %v180 = vld [vmem:[#allocation4 + $0x20] sm:$0xf]
    %v181 = vld [vmem:[#allocation4 + $0x24] sm:$0xf]
    %v182 = vld [vmem:[#allocation4 + $0x28] sm:$0xf]
    %v183 = vld [vmem:[#allocation4 + $0x2c] sm:$0xf]
    %v184 = vld [vmem:[#allocation4 + $0x30] sm:$0xf]
    %v185 = vld [vmem:[#allocation4 + $0x34] sm:$0xf]
    %v186 = vld [vmem:[#allocation4 + $0x38] sm:$0xf]
    %v187 = vld [vmem:[#allocation4 + $0x3c] sm:$0xf]
    %v188 = vld [vmem:[%s4] sm:$0x1]
    %v190 = vlaneseq
    %v191 = vshrl.u32 %v190, 7
    %v192 = vsub.s32 0, %v191
    %v193 = vrot.slane %v188, %v192
    %v211 = vunpack.c.l.b16 %v172
    %v212 = vunpack.c.l.b16 %v173
    %v213 = vunpack.c.l.b16 %v174
    %v214 = vunpack.c.l.b16 %v175
    %v215 = vunpack.c.l.b16 %v176
    %v216 = vunpack.c.l.b16 %v177
    %v217 = vunpack.c.l.b16 %v178
    %v218 = vunpack.c.l.b16 %v179
    %v219 = vunpack.c.l.b16 %v180
    %v220 = vunpack.c.l.b16 %v181
    %v221 = vunpack.c.l.b16 %v182
    %v222 = vunpack.c.l.b16 %v183
    %v223 = vunpack.c.l.b16 %v184
    %v224 = vunpack.c.l.b16 %v185
    %v225 = vunpack.c.l.b16 %v186
    %v226 = vunpack.c.l.b16 %v187
    %v227 = vpack.c.b16 %v212, %v211
    %v228 = vpack.c.b16 %v214, %v213
    %v229 = vpack.c.b16 %v216, %v215
    %v230 = vpack.c.b16 %v218, %v217
    %v231 = vpack.c.b16 %v220, %v219
    %v232 = vpack.c.b16 %v222, %v221
    %v233 = vpack.c.b16 %v224, %v223
    %v234 = vpack.c.b16 %v226, %v225
    %243 = vmatprep.subr.bf16.mxu0 0
    %244 = vmatpush1.bf16.msra.mxu0 %v227
    %245 = vmatprep.subr.bf16.mxu0 0
    %246 = vmatpush1.bf16.msra.mxu0 %v228
    %247 = vmatprep.subr.bf16.mxu0 0
    %248 = vmatpush1.bf16.msra.mxu0 %v229
    %249 = vmatprep.subr.bf16.mxu0 0
    %250 = vmatpush1.bf16.msra.mxu0 %v230
    %251 = vmatprep.subr.bf16.mxu0 0
    %252 = vmatpush1.bf16.msra.mxu0 %v231
    %253 = vmatprep.subr.bf16.mxu0 0
    %254 = vmatpush1.bf16.msra.mxu0 %v232
    %255 = vmatprep.subr.bf16.mxu0 0
    %256 = vmatpush1.bf16.msra.mxu0 %v233
    %257 = vmatprep.subr.bf16.mxu0 0
    %258 = vmatpush1.bf16.msra.mxu0 %v234
    %259 = vmatprep.subr.bf16.mxu0 0
    %260 = vmatpush1.bf16.msra.mxu0 0
    %261 = vmatprep.subr.bf16.mxu0 0
    %262 = vmatpush1.bf16.msra.mxu0 0
    %263 = vmatprep.subr.bf16.mxu0 0
    %264 = vmatpush1.bf16.msra.mxu0 0
    %265 = vmatprep.subr.bf16.mxu0 0
    %266 = vmatpush1.bf16.msra.mxu0 0
    %267 = vmatprep.subr.bf16.mxu0 0
    %268 = vmatpush1.bf16.msra.mxu0 0
    %269 = vmatprep.subr.bf16.mxu0 0
    %270 = vmatpush1.bf16.msra.mxu0 0
    %271 = vmatprep.subr.bf16.mxu0 0
    %272 = vmatpush1.bf16.msra.mxu0 0
    %273 = vmatprep.subr.bf16.mxu0 0
    %274 = vmatpush1.bf16.msra.mxu0 0
    %275 = vmatprep.mubr.bf16.mxu0 0
    %276 = vmatmul.mubr.bf16.gmra.mrb[0].mxu0 %v171
    %v277 = vpop.f32.mrb[0].mxu0
    %v278 = vadd.f32 %v193, %v277
    %v279 = vpop.f32.mrb[0].mxu0
    %v280 = vpop.f32.mrb[0].mxu0
    %v281 = vadd.f32 %v193, %v280
    %v282 = vpop.f32.mrb[0].mxu0
    %283 = vdwg.mxu0
    %284 = vmax.xlane.f32.xlu0 %v278
    %v285 = vpop.xlane.xlu0 %284
    %286 = vmax.xlane.f32.xlu0 %v281
    %v287 = vpop.xlane.xlu0 %286
    %v288 = vsub.f32 %v278, %v285
    %v289 = vsub.f32 %v281, %v287
    %v290 = vmul.f32 %v288, 1.442695
    %v291 = vpow.pop %v290
    %v292 = vmul.f32 %v289, 1.442695
    %v293 = vpow.pop %v292
    %294 = vadd.xlane.f32.xlu0 %v291
    %v295 = vpop.xlane.xlu0 %294
    %296 = vadd.xlane.f32.xlu0 %v293
    %v297 = vpop.xlane.xlu0 %296
    %v298 = vrcp.pop %v295
    %v299 = vmul.f32 %v291, %v298
    %v300 = vrcp.pop %v297
    %v301 = vmul.f32 %v293, %v300
    %302 = vst [vmem:[%s5] sm:$0xff] %v299
    %303 = vst [vmem:[%s5 + $0x8] sm:$0xff] %v301
    // Predicated region
    $region30: #{two_layer_nn_forward.1} parent=1 // pred_check
      _
    $region31: #{two_layer_nn_forward.1} parent=1 // pred_check_branch
      %305 = sbr.rel (0) target = $region33
    $region32: #{two_layer_nn_forward.1} parent=1 // pred_region
      _
    $region33: #{two_layer_nn_forward.1} parent=1 // pred_fallthru
      _
    // Predicated region
    $region34: #{two_layer_nn_forward.1} parent=1 // pred_check
      _
    $region35: #{two_layer_nn_forward.1} parent=1 // pred_check_branch
      %307 = sbr.rel (0) target = $region37
    $region36: #{two_layer_nn_forward.1} parent=1 // pred_region
      _
    $region37: #{two_layer_nn_forward.1} parent=1 // pred_fallthru
      _
    %308 = vsyncpa [#allocation3], 1
    %309 = vsyncpa [#allocation5], 1

</llo_original>
